<compile_context>
chip_gen: v6e
topology: v6e:2x2x1
jax: 0.10.0
libtpu: 0.0.40
codegen_flags: <defaults>
</compile_context>

<pallas_src>
import jax
import jax.numpy as jnp
from jax.experimental import pallas as pl
from jax.experimental.pallas import tpu as pltpu

TILE_B = 512  # batch rows per grid step (on the lane axis); multiple of 128


def qsagent_kernel(x_ref, w1_ref, b1_ref, w2_ref, b2_ref, w3_ref, b3_ref, o_ref):
    # x_ref: [27, TILE_B] bf16 ; w*: [out, in] bf16 ; b*: [out, 1] f32
    x = x_ref[...]
    h1 = jnp.dot(w1_ref[...], x, preferred_element_type=jnp.float32) + b1_ref[...]
    h1 = jnp.maximum(h1, 0.0)
    h2 = jnp.dot(w2_ref[...], h1.astype(jnp.bfloat16),
                 preferred_element_type=jnp.float32) + b2_ref[...]
    h2 = jnp.maximum(h2, 0.0)
    y = jnp.dot(w3_ref[...], h2.astype(jnp.bfloat16),
                preferred_element_type=jnp.float32) + b3_ref[...]
    o_ref[...] = jnp.tanh(y)  # [9, TILE_B] f32, lane-dense store


@jax.jit
def qsagent_forward(x, params):
    """x: [B, 27] float32 -> [B, 9] float32 (matches QSAgent.forward semantics)."""
    w1, b1, w2, b2, w3, b3 = params
    B = x.shape[0]
    n_tiles = pl.cdiv(B, TILE_B)
    B_pad = n_tiles * TILE_B

    # One transpose + pad in the wrapper (not per grid step): batch -> lanes.
    xt = jnp.pad(x.T, ((0, 0), (0, B_pad - B))).astype(jnp.bfloat16)  # [27, B_pad]

    def resident(shape):
        # Full block + constant index_map: stays in VMEM, never re-fetched.
        return pl.BlockSpec(shape, lambda i: (0, 0))

    out_t = pl.pallas_call(
        qsagent_kernel,
        out_shape=jax.ShapeDtypeStruct((9, B_pad), jnp.float32),
        grid_spec=pltpu.PrefetchScalarGridSpec(
            num_scalar_prefetch=0,
            grid=(n_tiles,),
            in_specs=[
                pl.BlockSpec((27, TILE_B), lambda i: (0, i)),  # x tile (batch on lanes)
                resident(w1.shape), resident(b1.shape),
                resident(w2.shape), resident(b2.shape),
                resident(w3.shape), resident(b3.shape),
            ],
            out_specs=pl.BlockSpec((9, TILE_B), lambda i: (0, i)),
        ),
        compiler_params=pltpu.CompilerParams(
            dimension_semantics=("parallel",),  # v7x: shard batch tiles across both TCs
        ),
    )(xt, w1, b1, w2, b2, w3, b3)

    return out_t[:, :B].T  # back to [B, 9]


def init_params(key):
    """Deterministic init mimicking nn.Linear default (uniform +/- 1/sqrt(fan_in)).

    Weights are kept in PyTorch [out, in] layout and stored bf16 (MXU inputs);
    biases are [out, 1] float32 (post-matmul math stays in f32).
    """
    sizes = [(27, 120), (120, 120), (120, 9)]
    params = []
    for fan_in, fan_out in sizes:
        key, kw, kb = jax.random.split(key, 3)
        bound = fan_in ** -0.5
        w = jax.random.uniform(kw, (fan_out, fan_in), jnp.float32, -bound, bound)
        b = jax.random.uniform(kb, (fan_out, 1), jnp.float32, -bound, bound)
        params.extend([w.astype(jnp.bfloat16), b])
    return tuple(params)


def reference_forward(x, params):
    """Pure-JAX f32 reference with the same parameters."""
    w1, b1, w2, b2, w3, b3 = params
    w1, w2, w3 = (w.astype(jnp.float32) for w in (w1, w2, w3))
    h1 = jax.nn.relu(x @ w1.T + b1.T)
    h2 = jax.nn.relu(h1 @ w2.T + b2.T)
    return jnp.tanh(h2 @ w3.T + b3.T)


if __name__ == "__main__":
    key = jax.random.PRNGKey(0)
    kp, kx = jax.random.split(key)
    params = init_params(kp)

    # Tic-tac-toe style state encoding: small batch of 27-dim inputs.
    x = jax.random.uniform(kx, (2, 27), jnp.float32, 0.0, 1.0)
    y = jax.block_until_ready(qsagent_forward(x, params))
    y_ref = reference_forward(x, params)
    assert y.shape == (2, 9)
    assert jnp.allclose(y, y_ref, atol=2e-2), float(jnp.max(jnp.abs(y - y_ref)))

    # Larger batch: exercises multiple grid steps plus a padded tail tile (700 -> 2*512).
    xb = jax.random.uniform(jax.random.PRNGKey(1), (700, 27), jnp.float32, 0.0, 1.0)
    yb = jax.block_until_ready(qsagent_forward(xb, params))
    yb_ref = reference_forward(xb, params)
    assert yb.shape == (700, 9)
    assert jnp.allclose(yb, yb_ref, atol=2e-2), float(jnp.max(jnp.abs(yb - yb_ref)))

    print("KERNEL_OK")
</pallas_src>

<mosaic_0001>
module attributes {stable_mosaic.version = 11 : i64} {
  func.func @qsagent_kernel(%arg0: i32, %arg1: memref<27x512xbf16, #tpu.memory_space<vmem>>, %arg2: memref<120x27xbf16, #tpu.memory_space<vmem>>, %arg3: memref<120x1xf32, #tpu.memory_space<vmem>>, %arg4: memref<120x120xbf16, #tpu.memory_space<vmem>>, %arg5: memref<120x1xf32, #tpu.memory_space<vmem>>, %arg6: memref<9x120xbf16, #tpu.memory_space<vmem>>, %arg7: memref<9x1xf32, #tpu.memory_space<vmem>>, %arg8: memref<9x512xf32, #tpu.memory_space<vmem>>) attributes {dimension_semantics = [#tpu.dimension_semantics<parallel>], iteration_bounds = array<i64: 1>, scalar_prefetch = 0 : i64, scratch_operands = 0 : i64, tpu.core_type = #tpu.core_type<tc>, window_params = [{transform_indices = @transform_0, window_bounds = array<i64: 27, 512>}, {pipeline_mode = #tpu.pipeline_mode<synchronous>, transform_indices = @transform_1, window_bounds = array<i64: 120, 27>}, {pipeline_mode = #tpu.pipeline_mode<synchronous>, transform_indices = @transform_2, window_bounds = array<i64: 120, 1>}, {pipeline_mode = #tpu.pipeline_mode<synchronous>, transform_indices = @transform_3, window_bounds = array<i64: 120, 120>}, {pipeline_mode = #tpu.pipeline_mode<synchronous>, transform_indices = @transform_4, window_bounds = array<i64: 120, 1>}, {pipeline_mode = #tpu.pipeline_mode<synchronous>, transform_indices = @transform_5, window_bounds = array<i64: 9, 120>}, {pipeline_mode = #tpu.pipeline_mode<synchronous>, transform_indices = @transform_6, window_bounds = array<i64: 9, 1>}, {transform_indices = @transform_7, window_bounds = array<i64: 9, 512>}]} {
    %c0 = arith.constant 0 : index
    %c0_0 = arith.constant 0 : index
    %0 = vector.load %arg1[%c0, %c0_0] : memref<27x512xbf16, #tpu.memory_space<vmem>>, vector<27x512xbf16>
    %c0_1 = arith.constant 0 : index
    %c0_2 = arith.constant 0 : index
    %1 = vector.load %arg2[%c0_1, %c0_2] : memref<120x27xbf16, #tpu.memory_space<vmem>>, vector<120x27xbf16>
    %cst = arith.constant dense<0.000000e+00> : vector<120x512xf32>
    %2 = tpu.matmul %1, %0, %cst {dimension_numbers = #tpu.dot_dimension_numbers<[1], [0], [0], [1], [0, 0, 1, 1], [], []>} : vector<120x27xbf16>, vector<27x512xbf16>, vector<120x512xf32> -> vector<120x512xf32>
    %c0_3 = arith.constant 0 : index
    %c0_4 = arith.constant 0 : index
    %3 = vector.load %arg3[%c0_3, %c0_4] : memref<120x1xf32, #tpu.memory_space<vmem>>, vector<120x1xf32>
    %4 = vector.broadcast %3 : vector<120x1xf32> to vector<120x512xf32>
    %5 = arith.addf %2, %4 : vector<120x512xf32>
    %cst_5 = arith.constant 0.000000e+00 : f32
    %6 = vector.broadcast %cst_5 : f32 to vector<120x512xf32>
    %7 = arith.maximumf %5, %6 : vector<120x512xf32>
    %c0_6 = arith.constant 0 : index
    %c0_7 = arith.constant 0 : index
    %8 = vector.load %arg4[%c0_6, %c0_7] : memref<120x120xbf16, #tpu.memory_space<vmem>>, vector<120x120xbf16>
    %9 = arith.truncf %7 : vector<120x512xf32> to vector<120x512xbf16>
    %cst_8 = arith.constant dense<0.000000e+00> : vector<120x512xf32>
    %10 = tpu.matmul %8, %9, %cst_8 {dimension_numbers = #tpu.dot_dimension_numbers<[1], [0], [0], [1], [0, 0, 1, 1], [], []>} : vector<120x120xbf16>, vector<120x512xbf16>, vector<120x512xf32> -> vector<120x512xf32>
    %c0_9 = arith.constant 0 : index
    %c0_10 = arith.constant 0 : index
    %11 = vector.load %arg5[%c0_9, %c0_10] : memref<120x1xf32, #tpu.memory_space<vmem>>, vector<120x1xf32>
    %12 = vector.broadcast %11 : vector<120x1xf32> to vector<120x512xf32>
    %13 = arith.addf %10, %12 : vector<120x512xf32>
    %cst_11 = arith.constant 0.000000e+00 : f32
    %14 = vector.broadcast %cst_11 : f32 to vector<120x512xf32>
    %15 = arith.maximumf %13, %14 : vector<120x512xf32>
    %c0_12 = arith.constant 0 : index
    %c0_13 = arith.constant 0 : index
    %16 = vector.load %arg6[%c0_12, %c0_13] : memref<9x120xbf16, #tpu.memory_space<vmem>>, vector<9x120xbf16>
    %17 = arith.truncf %15 : vector<120x512xf32> to vector<120x512xbf16>
    %cst_14 = arith.constant dense<0.000000e+00> : vector<9x512xf32>
    %18 = tpu.matmul %16, %17, %cst_14 {dimension_numbers = #tpu.dot_dimension_numbers<[1], [0], [0], [1], [0, 0, 1, 1], [], []>} : vector<9x120xbf16>, vector<120x512xbf16>, vector<9x512xf32> -> vector<9x512xf32>
    %c0_15 = arith.constant 0 : index
    %c0_16 = arith.constant 0 : index
    %19 = vector.load %arg7[%c0_15, %c0_16] : memref<9x1xf32, #tpu.memory_space<vmem>>, vector<9x1xf32>
    %20 = vector.broadcast %19 : vector<9x1xf32> to vector<9x512xf32>
    %21 = arith.addf %18, %20 : vector<9x512xf32>
    %22 = math.tanh %21 : vector<9x512xf32>
    %c0_17 = arith.constant 0 : index
    %c0_18 = arith.constant 0 : index
    %23 = vector.load %arg8[%c0_17, %c0_18] : memref<9x512xf32, #tpu.memory_space<vmem>>, vector<9x512xf32>
    tpu.vector_store %arg8[%c0_17, %c0_18], %22 {strides = array<i32>} : memref<9x512xf32, #tpu.memory_space<vmem>>, vector<9x512xf32>,
    return
  }
  func.func @transform_0(%arg0: i32) -> (i32, i32) {
    %c0_i32 = arith.constant 0 : i32
    %c0_i32_0 = arith.constant 0 : i32
    return %c0_i32, %arg0 : i32, i32
  }
  func.func @transform_1(%arg0: i32) -> (i32, i32) {
    %c0_i32 = arith.constant 0 : i32
    %c0_i32_0 = arith.constant 0 : i32
    %c0_i32_1 = arith.constant 0 : i32
    return %c0_i32, %c0_i32_0 : i32, i32
  }
  func.func @transform_2(%arg0: i32) -> (i32, i32) {
    %c0_i32 = arith.constant 0 : i32
    %c0_i32_0 = arith.constant 0 : i32
    %c0_i32_1 = arith.constant 0 : i32
    return %c0_i32, %c0_i32_0 : i32, i32
  }
  func.func @transform_3(%arg0: i32) -> (i32, i32) {
    %c0_i32 = arith.constant 0 : i32
    %c0_i32_0 = arith.constant 0 : i32
    %c0_i32_1 = arith.constant 0 : i32
    return %c0_i32, %c0_i32_0 : i32, i32
  }
  func.func @transform_4(%arg0: i32) -> (i32, i32) {
    %c0_i32 = arith.constant 0 : i32
    %c0_i32_0 = arith.constant 0 : i32
    %c0_i32_1 = arith.constant 0 : i32
    return %c0_i32, %c0_i32_0 : i32, i32
  }
  func.func @transform_5(%arg0: i32) -> (i32, i32) {
    %c0_i32 = arith.constant 0 : i32
    %c0_i32_0 = arith.constant 0 : i32
    %c0_i32_1 = arith.constant 0 : i32
    return %c0_i32, %c0_i32_0 : i32, i32
  }
  func.func @transform_6(%arg0: i32) -> (i32, i32) {
    %c0_i32 = arith.constant 0 : i32
    %c0_i32_0 = arith.constant 0 : i32
    %c0_i32_1 = arith.constant 0 : i32
    return %c0_i32, %c0_i32_0 : i32, i32
  }
  func.func @transform_7(%arg0: i32) -> (i32, i32) {
    %c0_i32 = arith.constant 0 : i32
    %c0_i32_0 = arith.constant 0 : i32
    return %c0_i32, %arg0 : i32, i32
  }
}

</mosaic_0001>

<llo_original>
// kernel: qsagent_forward.1
$region0: #{qsagent_forward.1}
  #allocation0 [shape = 'u32[]', space=smem, size = 0x4, offset = 0x4, fixed_abs, tag = 'smem constant byte address 0x4 - core index']
  #allocation1 [shape = 'u32[144,128]{1,0:T(1,128)}', space=vmem, size = 0x12000, scoped, tag = 'internal scratch']
  %s0 = inlined_call_operand.vmem [shape: bf16[27,512], index: 0, kind: input, shape index: {}]
  %s1 = inlined_call_operand.vmem [shape: bf16[120,27], index: 1, kind: input, shape index: {}]
  %s2 = inlined_call_operand.vmem [shape: f32[120,1], index: 2, kind: input, shape index: {}]
  %s3 = inlined_call_operand.vmem [shape: bf16[120,120], index: 3, kind: input, shape index: {}]
  %s4 = inlined_call_operand.vmem [shape: f32[120,1], index: 4, kind: input, shape index: {}]
  %s5 = inlined_call_operand.vmem [shape: bf16[9,120], index: 5, kind: input, shape index: {}]
  %s6 = inlined_call_operand.vmem [shape: f32[9,1], index: 6, kind: input, shape index: {}]
  %s7 = inlined_call_operand.vmem [shape: f32[9,512], index: 7, kind: output, shape index: {}]
  %s8 = sld [smem:[#allocation0]]
  $region38: #{qsagent_forward.1} parent=0
    _
  %s10 = ssub.s32 1, %s8
  %s11 = scalar_select 0, %s10, %s8
  // Predicated region
  $region2: #{qsagent_forward.1} parent=0 // pred_check
    _
  $region3: #{qsagent_forward.1} parent=0 // pred_check_branch
    %13 = sbr.rel (0) target = $region5
  $region4: #{qsagent_forward.1} parent=0 // pred_region
    _
  $region5: #{qsagent_forward.1} parent=0 // pred_fallthru
    _
  // Predicated region
  $region6: #{qsagent_forward.1} parent=0 // pred_check
    _
  $region7: #{qsagent_forward.1} parent=0 // pred_check_branch
    %15 = sbr.rel (0) target = $region9
  $region8: #{qsagent_forward.1} parent=0 // pred_region
    _
  $region9: #{qsagent_forward.1} parent=0 // pred_fallthru
    _
  // Predicated region
  $region10: #{qsagent_forward.1} parent=0 // pred_check
    _
  $region11: #{qsagent_forward.1} parent=0 // pred_check_branch
    %17 = sbr.rel (0) target = $region13
  $region12: #{qsagent_forward.1} parent=0 // pred_region
    _
  $region13: #{qsagent_forward.1} parent=0 // pred_fallthru
    _
  // Predicated region
  $region14: #{qsagent_forward.1} parent=0 // pred_check
    _
  $region15: #{qsagent_forward.1} parent=0 // pred_check_branch
    %19 = sbr.rel (0) target = $region17
  $region16: #{qsagent_forward.1} parent=0 // pred_region
    _
  $region17: #{qsagent_forward.1} parent=0 // pred_fallthru
    _
  // Predicated region
  $region18: #{qsagent_forward.1} parent=0 // pred_check
    _
  $region19: #{qsagent_forward.1} parent=0 // pred_check_branch
    %21 = sbr.rel (0) target = $region21
  $region20: #{qsagent_forward.1} parent=0 // pred_region
    _
  $region21: #{qsagent_forward.1} parent=0 // pred_fallthru
    _
  // Predicated region
  $region22: #{qsagent_forward.1} parent=0 // pred_check
    _
  $region23: #{qsagent_forward.1} parent=0 // pred_check_branch
    %23 = sbr.rel (0) target = $region25
  $region24: #{qsagent_forward.1} parent=0 // pred_region
    _
  $region25: #{qsagent_forward.1} parent=0 // pred_fallthru
    _
  // Predicated region
  $region26: #{qsagent_forward.1} parent=0 // pred_check
    _
  $region27: #{qsagent_forward.1} parent=0 // pred_check_branch
    %25 = sbr.rel (0) target = $region29
  $region28: #{qsagent_forward.1} parent=0 // pred_region
    _
  $region29: #{qsagent_forward.1} parent=0 // pred_fallthru
    _
  %v27 = vld [vmem:[%s0] sm:$0xff]
  %v28 = vld [vmem:[%s0 + $0x8] sm:$0xff]
  %v29 = vld [vmem:[%s0 + $0x10] sm:$0xff]
  %v30 = vld [vmem:[%s0 + $0x18] sm:$0xff]
  %v31 = vld [vmem:[%s0 + $0x20] sm:$0xff]
  %v32 = vld [vmem:[%s0 + $0x28] sm:$0xff]
  %v33 = vld [vmem:[%s0 + $0x30] sm:$0x33]
  %v34 = vld [vmem:[%s0 + $0x38] sm:$0x33]
  %v35 = vld [vmem:[%s1] sm:$0xf]
  %v36 = vld [vmem:[%s1 + $0x4] sm:$0xf]
  %v37 = vld [vmem:[%s1 + $0x8] sm:$0xf]
  %v38 = vld [vmem:[%s1 + $0xc] sm:$0xf]
  %v39 = vld [vmem:[%s1 + $0x10] sm:$0xf]
  %v40 = vld [vmem:[%s1 + $0x14] sm:$0xf]
  %v41 = vld [vmem:[%s1 + $0x18] sm:$0xf]
  %v42 = vld [vmem:[%s1 + $0x1c] sm:$0xf]
  %v43 = vld [vmem:[%s1 + $0x20] sm:$0xf]
  %v44 = vld [vmem:[%s1 + $0x24] sm:$0xf]
  %v45 = vld [vmem:[%s1 + $0x28] sm:$0xf]
  %v46 = vld [vmem:[%s1 + $0x2c] sm:$0xf]
  %v47 = vld [vmem:[%s1 + $0x30] sm:$0xf]
  %v48 = vld [vmem:[%s1 + $0x34] sm:$0xf]
  %v49 = vld [vmem:[%s1 + $0x38] sm:$0xf]
  %v50 = vld [vmem:[%s2] sm:$0xff]
  %v51 = vld [vmem:[%s2 + $0x8] sm:$0xff]
  %v52 = vld [vmem:[%s2 + $0x10] sm:$0xff]
  %v53 = vld [vmem:[%s2 + $0x18] sm:$0xff]
  %v54 = vld [vmem:[%s2 + $0x20] sm:$0xff]
  %v55 = vld [vmem:[%s2 + $0x28] sm:$0xff]
  %v56 = vld [vmem:[%s2 + $0x30] sm:$0xff]
  %v57 = vld [vmem:[%s2 + $0x38] sm:$0xff]
  %v58 = vld [vmem:[%s2 + $0x40] sm:$0xff]
  %v59 = vld [vmem:[%s2 + $0x48] sm:$0xff]
  %v60 = vld [vmem:[%s2 + $0x50] sm:$0xff]
  %v61 = vld [vmem:[%s2 + $0x58] sm:$0xff]
  %v62 = vld [vmem:[%s2 + $0x60] sm:$0xff]
  %v63 = vld [vmem:[%s2 + $0x68] sm:$0xff]
  %v64 = vld [vmem:[%s2 + $0x70] sm:$0xff]
  %66 = vset.pattern.permute.xlu0 0
  %67 = vperm.xlu0 %66, %v50
  %v68 = vpop.permute.xlu0 %67
  %71 = vset.pattern.permute.xlu0 0
  %72 = vperm.xlu0 %71, %v51
  %v73 = vpop.permute.xlu0 %72
  %76 = vset.pattern.permute.xlu0 0
  %77 = vperm.xlu0 %76, %v52
  %v78 = vpop.permute.xlu0 %77
  %81 = vset.pattern.permute.xlu0 0
  %82 = vperm.xlu0 %81, %v53
  %v83 = vpop.permute.xlu0 %82
  %86 = vset.pattern.permute.xlu0 0
  %87 = vperm.xlu0 %86, %v54
  %v88 = vpop.permute.xlu0 %87
  %91 = vset.pattern.permute.xlu0 0
  %92 = vperm.xlu0 %91, %v55
  %v93 = vpop.permute.xlu0 %92
  %96 = vset.pattern.permute.xlu0 0
  %97 = vperm.xlu0 %96, %v56
  %v98 = vpop.permute.xlu0 %97
  %101 = vset.pattern.permute.xlu0 0
  %102 = vperm.xlu0 %101, %v57
  %v103 = vpop.permute.xlu0 %102
  %106 = vset.pattern.permute.xlu0 0
  %107 = vperm.xlu0 %106, %v58
  %v108 = vpop.permute.xlu0 %107
  %111 = vset.pattern.permute.xlu0 0
  %112 = vperm.xlu0 %111, %v59
  %v113 = vpop.permute.xlu0 %112
  %116 = vset.pattern.permute.xlu0 0
  %117 = vperm.xlu0 %116, %v60
  %v118 = vpop.permute.xlu0 %117
  %121 = vset.pattern.permute.xlu0 0
  %122 = vperm.xlu0 %121, %v61
  %v123 = vpop.permute.xlu0 %122
  %126 = vset.pattern.permute.xlu0 0
  %127 = vperm.xlu0 %126, %v62
  %v128 = vpop.permute.xlu0 %127
  %131 = vset.pattern.permute.xlu0 0
  %132 = vperm.xlu0 %131, %v63
  %v133 = vpop.permute.xlu0 %132
  %136 = vset.pattern.permute.xlu0 0
  %137 = vperm.xlu0 %136, %v64
  %v138 = vpop.permute.xlu0 %137
  %v155 = vunpack.c.l.b16 %v35
  %v156 = vunpack.c.l.b16 %v36
  %v157 = vunpack.c.l.b16 %v37
  %v158 = vunpack.c.l.b16 %v38
  %v159 = vunpack.c.l.b16 %v39
  %v160 = vunpack.c.l.b16 %v40
  %v161 = vunpack.c.l.b16 %v41
  %v162 = vunpack.c.l.b16 %v42
  %v163 = vunpack.c.l.b16 %v43
  %v164 = vunpack.c.l.b16 %v44
  %v165 = vunpack.c.l.b16 %v45
  %v166 = vunpack.c.l.b16 %v46
  %v167 = vunpack.c.l.b16 %v47
  %v168 = vunpack.c.l.b16 %v48
  %v169 = vunpack.c.l.b16 %v49
  %v170 = vpack.c.b16 %v156, %v155
  %v171 = vpack.c.b16 %v158, %v157
  %v172 = vpack.c.b16 %v160, %v159
  %v173 = vpack.c.b16 %v162, %v161
  %v174 = vpack.c.b16 %v164, %v163
  %v175 = vpack.c.b16 %v166, %v165
  %v176 = vpack.c.b16 %v168, %v167
  %v177 = vpack.c.b16 %v169, %v169
  %v186 = vunpack.c.l.b16 %v27
  %v187 = vunpack.c.h.b16 %v27
  %v188 = vunpack.c.l.b16 %v28
  %v189 = vunpack.c.h.b16 %v28
  %v190 = vunpack.c.l.b16 %v29
  %v191 = vunpack.c.h.b16 %v29
  %v192 = vunpack.c.l.b16 %v30
  %v193 = vunpack.c.h.b16 %v30
  %v194 = vunpack.c.l.b16 %v31
  %v195 = vunpack.c.h.b16 %v31
  %v196 = vunpack.c.l.b16 %v32
  %v197 = vunpack.c.h.b16 %v32
  %v198 = vunpack.c.l.b16 %v33
  %v199 = vunpack.c.h.b16 %v33
  %v200 = vunpack.c.l.b16 %v34
  %v201 = vunpack.c.h.b16 %v34
  %v202 = vpack.c.b16 %v190, %v186
  %v203 = vpack.c.b16 %v191, %v187
  %v204 = vpack.c.b16 %v192, %v188
  %v205 = vpack.c.b16 %v193, %v189
  %v206 = vpack.c.b16 %v198, %v194
  %v207 = vpack.c.b16 %v199, %v195
  %v208 = vpack.c.b16 %v200, %v196
  %v209 = vpack.c.b16 %v201, %v197
  %vm214 = vcmask 220160
  %v216 = vsel %vm214, %v170, 0
  %v219 = vsel %vm214, %v171, 0
  %v222 = vsel %vm214, %v172, 0
  %v225 = vsel %vm214, %v173, 0
  %v228 = vsel %vm214, %v174, 0
  %v231 = vsel %vm214, %v175, 0
  %v234 = vsel %vm214, %v176, 0
  %v237 = vsel %vm214, %v177, 0
  %vm239 = vcmask 1044480
  %vm240 = vcmask 1045504
  %v241 = vsel %vm239, 4294967295, 65535
  %v242 = vsel %vm240, %v241, 0
  %v244 = vand.u32 %v206, %v242
  %v247 = vand.u32 %v207, %v242
  %v250 = vand.u32 %v208, %v242
  %v253 = vand.u32 %v209, %v242
  %255 = vmatprep.subr.bf16.mxu0 0
  %256 = vmatpush1.bf16.msra.mxu0 0
  %257 = vmatprep.subr.bf16.mxu0 0
  %258 = vmatpush1.bf16.msra.mxu0 0
  %259 = vmatprep.subr.bf16.mxu0 0
  %260 = vmatpush1.bf16.msra.mxu0 0
  %261 = vmatprep.subr.bf16.mxu0 0
  %262 = vmatpush1.bf16.msra.mxu0 0
  %263 = vmatprep.subr.bf16.mxu0 0
  %264 = vmatpush1.bf16.msra.mxu0 0
  %265 = vmatprep.subr.bf16.mxu0 0
  %266 = vmatpush1.bf16.msra.mxu0 0
  %267 = vmatprep.subr.bf16.mxu0 %v247
  %268 = vmatpush1.bf16.msra.mxu0 %v244
  %269 = vmatprep.subr.bf16.mxu0 %v203
  %270 = vmatpush1.bf16.msra.mxu0 %v202
  %271 = vmatprep.subr.bf16.mxu0 0
  %272 = vmatpush2.bf16.msra.mxu0 0
  %273 = vmatprep.subr.bf16.mxu0 0
  %274 = vmatpush2.bf16.msra.mxu0 0
  %275 = vmatprep.subr.bf16.mxu0 0
  %276 = vmatpush2.bf16.msra.mxu0 0
  %277 = vmatprep.subr.bf16.mxu0 0
  %278 = vmatpush2.bf16.msra.mxu0 0
  %279 = vmatprep.subr.bf16.mxu0 0
  %280 = vmatpush2.bf16.msra.mxu0 0
  %281 = vmatprep.subr.bf16.mxu0 0
  %282 = vmatpush2.bf16.msra.mxu0 0
  %283 = vmatprep.subr.bf16.mxu0 0
  %284 = vmatpush2.bf16.msra.mxu0 0
  %285 = vmatprep.subr.bf16.mxu0 0
  %286 = vmatpush2.bf16.msra.mxu0 0
  %287 = vmatprep.mubr.bf16.mxu0 0
  %288 = vmatmul.mubr.bf16.gmra.mxu0 %v216
  %v289 = vpop.f32.mrf.mxu0
  %v290 = vadd.f32 %v68, %v289
  %v291 = vpop.f32.mrf.mxu0
  %v292 = vadd.f32 %v68, %v291
  %v293 = vpop.f32.mrf.mxu0
  %v294 = vadd.f32 %v73, %v293
  %v295 = vpop.f32.mrf.mxu0
  %v296 = vadd.f32 %v73, %v295
  %297 = vmatprep.mubr.bf16.mxu0 0
  %298 = vmatmul.mubr.bf16.gmra.mxu0 %v219
  %v299 = vpop.f32.mrf.mxu0
  %v300 = vadd.f32 %v78, %v299
  %v301 = vpop.f32.mrf.mxu0
  %v302 = vadd.f32 %v78, %v301
  %v303 = vpop.f32.mrf.mxu0
  %v304 = vadd.f32 %v83, %v303
  %v305 = vpop.f32.mrf.mxu0
  %v306 = vadd.f32 %v83, %v305
  %307 = vmatprep.mubr.bf16.mxu0 0
  %308 = vmatmul.mubr.bf16.gmra.mxu0 %v222
  %v309 = vpop.f32.mrf.mxu0
  %v310 = vadd.f32 %v88, %v309
  %v311 = vpop.f32.mrf.mxu0
  %v312 = vadd.f32 %v88, %v311
  %v313 = vpop.f32.mrf.mxu0
  %v314 = vadd.f32 %v93, %v313
  %v315 = vpop.f32.mrf.mxu0
  %v316 = vadd.f32 %v93, %v315
  %317 = vmatprep.mubr.bf16.mxu0 0
  %318 = vmatmul.mubr.bf16.gmra.mxu0 %v225
  %v319 = vpop.f32.mrf.mxu0
  %v320 = vadd.f32 %v98, %v319
  %v321 = vpop.f32.mrf.mxu0
  %v322 = vadd.f32 %v98, %v321
  %v323 = vpop.f32.mrf.mxu0
  %v324 = vadd.f32 %v103, %v323
  %v325 = vpop.f32.mrf.mxu0
  %v326 = vadd.f32 %v103, %v325
  %327 = vmatprep.mubr.bf16.mxu0 0
  %328 = vmatmul.mubr.bf16.gmra.mxu0 %v228
  %v329 = vpop.f32.mrf.mxu0
  %v330 = vadd.f32 %v108, %v329
  %v331 = vpop.f32.mrf.mxu0
  %v332 = vadd.f32 %v108, %v331
  %v333 = vpop.f32.mrf.mxu0
  %v334 = vadd.f32 %v113, %v333
  %v335 = vpop.f32.mrf.mxu0
  %v336 = vadd.f32 %v113, %v335
  %337 = vmatprep.mubr.bf16.mxu0 0
  %338 = vmatmul.mubr.bf16.gmra.mxu0 %v231
  %v339 = vpop.f32.mrf.mxu0
  %v340 = vadd.f32 %v118, %v339
  %v341 = vpop.f32.mrf.mxu0
  %v342 = vadd.f32 %v118, %v341
  %v343 = vpop.f32.mrf.mxu0
  %v344 = vadd.f32 %v123, %v343
  %v345 = vpop.f32.mrf.mxu0
  %v346 = vadd.f32 %v123, %v345
  %347 = vmatprep.mubr.bf16.mxu0 0
  %348 = vmatmul.mubr.bf16.gmra.mxu0 %v234
  %v349 = vpop.f32.mrf.mxu0
  %v350 = vadd.f32 %v128, %v349
  %v351 = vpop.f32.mrf.mxu0
  %v352 = vadd.f32 %v128, %v351
  %v353 = vpop.f32.mrf.mxu0
  %v354 = vadd.f32 %v133, %v353
  %v355 = vpop.f32.mrf.mxu0
  %v356 = vadd.f32 %v133, %v355
  %357 = vmatprep.mubr.bf16.mxu0 0
  %358 = vmatmul.mubr.bf16.gmra.mxu0 %v237
  %v359 = vpop.f32.mrf.mxu0
  %v360 = vadd.f32 %v138, %v359
  %v361 = vpop.f32.mrf.mxu0
  %v362 = vadd.f32 %v138, %v361
  %v363 = vpop.f32.mrf.mxu0
  %v364 = vpop.f32.mrf.mxu0
  %365 = vdwg.mxu0
  %366 = vmatprep.subr.bf16.mxu0 0
  %367 = vmatpush1.bf16.msra.mxu0 0
  %368 = vmatprep.subr.bf16.mxu0 0
  %369 = vmatpush1.bf16.msra.mxu0 0
  %370 = vmatprep.subr.bf16.mxu0 0
  %371 = vmatpush1.bf16.msra.mxu0 0
  %372 = vmatprep.subr.bf16.mxu0 0
  %373 = vmatpush1.bf16.msra.mxu0 0
  %374 = vmatprep.subr.bf16.mxu0 0
  %375 = vmatpush1.bf16.msra.mxu0 0
  %376 = vmatprep.subr.bf16.mxu0 0
  %377 = vmatpush1.bf16.msra.mxu0 0
  %378 = vmatprep.subr.bf16.mxu0 %v253
  %379 = vmatpush1.bf16.msra.mxu0 %v250
  %380 = vmatprep.subr.bf16.mxu0 %v205
  %381 = vmatpush1.bf16.msra.mxu0 %v204
  %382 = vmatprep.subr.bf16.mxu0 0
  %383 = vmatpush2.bf16.msra.mxu0 0
  %384 = vmatprep.subr.bf16.mxu0 0
  %385 = vmatpush2.bf16.msra.mxu0 0
  %386 = vmatprep.subr.bf16.mxu0 0
  %387 = vmatpush2.bf16.msra.mxu0 0
  %388 = vmatprep.subr.bf16.mxu0 0
  %389 = vmatpush2.bf16.msra.mxu0 0
  %390 = vmatprep.subr.bf16.mxu0 0
  %391 = vmatpush2.bf16.msra.mxu0 0
  %392 = vmatprep.subr.bf16.mxu0 0
  %393 = vmatpush2.bf16.msra.mxu0 0
  %394 = vmatprep.subr.bf16.mxu0 0
  %395 = vmatpush2.bf16.msra.mxu0 0
  %396 = vmatprep.subr.bf16.mxu0 0
  %397 = vmatpush2.bf16.msra.mxu0 0
  %398 = vmatprep.mubr.bf16.mxu0 0
  %399 = vmatmul.mubr.bf16.gmra.mxu0 %v216
  %v400 = vpop.f32.mrf.mxu0
  %v401 = vadd.f32 %v68, %v400
  %v402 = vpop.f32.mrf.mxu0
  %v403 = vadd.f32 %v68, %v402
  %v404 = vpop.f32.mrf.mxu0
  %v405 = vadd.f32 %v73, %v404
  %v406 = vpop.f32.mrf.mxu0
  %v407 = vadd.f32 %v73, %v406
  %408 = vmatprep.mubr.bf16.mxu0 0
  %409 = vmatmul.mubr.bf16.gmra.mxu0 %v219
  %v410 = vpop.f32.mrf.mxu0
  %v411 = vadd.f32 %v78, %v410
  %v412 = vpop.f32.mrf.mxu0
  %v413 = vadd.f32 %v78, %v412
  %v414 = vpop.f32.mrf.mxu0
  %v415 = vadd.f32 %v83, %v414
  %v416 = vpop.f32.mrf.mxu0
  %v417 = vadd.f32 %v83, %v416
  %418 = vmatprep.mubr.bf16.mxu0 0
  %419 = vmatmul.mubr.bf16.gmra.mxu0 %v222
  %v420 = vpop.f32.mrf.mxu0
  %v421 = vadd.f32 %v88, %v420
  %v422 = vpop.f32.mrf.mxu0
  %v423 = vadd.f32 %v88, %v422
  %v424 = vpop.f32.mrf.mxu0
  %v425 = vadd.f32 %v93, %v424
  %v426 = vpop.f32.mrf.mxu0
  %v427 = vadd.f32 %v93, %v426
  %428 = vmatprep.mubr.bf16.mxu0 0
  %429 = vmatmul.mubr.bf16.gmra.mxu0 %v225
  %v430 = vpop.f32.mrf.mxu0
  %v431 = vadd.f32 %v98, %v430
  %v432 = vpop.f32.mrf.mxu0
  %v433 = vadd.f32 %v98, %v432
  %v434 = vpop.f32.mrf.mxu0
  %v435 = vadd.f32 %v103, %v434
  %v436 = vpop.f32.mrf.mxu0
  %v437 = vadd.f32 %v103, %v436
  %438 = vmatprep.mubr.bf16.mxu0 0
  %439 = vmatmul.mubr.bf16.gmra.mxu0 %v228
  %v440 = vpop.f32.mrf.mxu0
  %v441 = vadd.f32 %v108, %v440
  %v442 = vpop.f32.mrf.mxu0
  %v443 = vadd.f32 %v108, %v442
  %v444 = vpop.f32.mrf.mxu0
  %v445 = vadd.f32 %v113, %v444
  %v446 = vpop.f32.mrf.mxu0
  %v447 = vadd.f32 %v113, %v446
  %448 = vmatprep.mubr.bf16.mxu0 0
  %449 = vmatmul.mubr.bf16.gmra.mxu0 %v231
  %v450 = vpop.f32.mrf.mxu0
  %v451 = vadd.f32 %v118, %v450
  %v452 = vpop.f32.mrf.mxu0
  %v453 = vadd.f32 %v118, %v452
  %v454 = vpop.f32.mrf.mxu0
  %v455 = vadd.f32 %v123, %v454
  %v456 = vpop.f32.mrf.mxu0
  %v457 = vadd.f32 %v123, %v456
  %458 = vmatprep.mubr.bf16.mxu0 0
  %459 = vmatmul.mubr.bf16.gmra.mxu0 %v234
  %v460 = vpop.f32.mrf.mxu0
  %v461 = vadd.f32 %v128, %v460
  %v462 = vpop.f32.mrf.mxu0
  %v463 = vadd.f32 %v128, %v462
  %v464 = vpop.f32.mrf.mxu0
  %v465 = vadd.f32 %v133, %v464
  %v466 = vpop.f32.mrf.mxu0
  %v467 = vadd.f32 %v133, %v466
  %468 = vmatprep.mubr.bf16.mxu0 0
  %469 = vmatmul.mubr.bf16.gmra.mxu0 %v237
  %v470 = vpop.f32.mrf.mxu0
  %v471 = vadd.f32 %v138, %v470
  %v472 = vpop.f32.mrf.mxu0
  %v473 = vadd.f32 %v138, %v472
  %v474 = vpop.f32.mrf.mxu0
  %v475 = vpop.f32.mrf.mxu0
  %476 = vdwg.mxu0
  %v477 = vmax.f32 %v290, 0.0
  %v478 = vmax.f32 %v292, 0.0
  %v479 = vmax.f32 %v401, 0.0
  %v480 = vmax.f32 %v403, 0.0
  %v481 = vmax.f32 %v294, 0.0
  %v482 = vmax.f32 %v296, 0.0
  %v483 = vmax.f32 %v405, 0.0
  %v484 = vmax.f32 %v407, 0.0
  %v485 = vmax.f32 %v300, 0.0
  %v486 = vmax.f32 %v302, 0.0
  %v487 = vmax.f32 %v411, 0.0
  %v488 = vmax.f32 %v413, 0.0
  %v489 = vmax.f32 %v304, 0.0
  %v490 = vmax.f32 %v306, 0.0
  %v491 = vmax.f32 %v415, 0.0
  %v492 = vmax.f32 %v417, 0.0
  %v493 = vmax.f32 %v310, 0.0
  %v494 = vmax.f32 %v312, 0.0
  %v495 = vmax.f32 %v421, 0.0
  %v496 = vmax.f32 %v423, 0.0
  %v497 = vmax.f32 %v314, 0.0
  %v498 = vmax.f32 %v316, 0.0
  %v499 = vmax.f32 %v425, 0.0
  %v500 = vmax.f32 %v427, 0.0
  %v501 = vmax.f32 %v320, 0.0
  %v502 = vmax.f32 %v322, 0.0
  %v503 = vmax.f32 %v431, 0.0
  %v504 = vmax.f32 %v433, 0.0
  %v505 = vmax.f32 %v324, 0.0
  %v506 = vmax.f32 %v326, 0.0
  %v507 = vmax.f32 %v435, 0.0
  %v508 = vmax.f32 %v437, 0.0
  %v509 = vmax.f32 %v330, 0.0
  %v510 = vmax.f32 %v332, 0.0
  %v511 = vmax.f32 %v441, 0.0
  %v512 = vmax.f32 %v443, 0.0
  %v513 = vmax.f32 %v334, 0.0
  %v514 = vmax.f32 %v336, 0.0
  %v515 = vmax.f32 %v445, 0.0
  %v516 = vmax.f32 %v447, 0.0
  %v517 = vmax.f32 %v340, 0.0
  %v518 = vmax.f32 %v342, 0.0
  %v519 = vmax.f32 %v451, 0.0
  %v520 = vmax.f32 %v453, 0.0
  %v521 = vmax.f32 %v344, 0.0
  %v522 = vmax.f32 %v346, 0.0
  %v523 = vmax.f32 %v455, 0.0
  %v524 = vmax.f32 %v457, 0.0
  %v525 = vmax.f32 %v350, 0.0
  %v526 = vmax.f32 %v352, 0.0
  %v527 = vmax.f32 %v461, 0.0
  %v528 = vmax.f32 %v463, 0.0
  %v529 = vmax.f32 %v354, 0.0
  %v530 = vmax.f32 %v356, 0.0
  %v531 = vmax.f32 %v465, 0.0
  %v532 = vmax.f32 %v467, 0.0
  %v533 = vmax.f32 %v360, 0.0
  %v534 = vmax.f32 %v362, 0.0
  %v535 = vmax.f32 %v471, 0.0
  %v536 = vmax.f32 %v473, 0.0
  %v537 = vld [vmem:[%s3] sm:$0xf]
  %v538 = vld [vmem:[%s3 + $0x4] sm:$0xf]
  %v539 = vld [vmem:[%s3 + $0x8] sm:$0xf]
  %v540 = vld [vmem:[%s3 + $0xc] sm:$0xf]
  %v541 = vld [vmem:[%s3 + $0x10] sm:$0xf]
  %v542 = vld [vmem:[%s3 + $0x14] sm:$0xf]
  %v543 = vld [vmem:[%s3 + $0x18] sm:$0xf]
  %v544 = vld [vmem:[%s3 + $0x1c] sm:$0xf]
  %v545 = vld [vmem:[%s3 + $0x20] sm:$0xf]
  %v546 = vld [vmem:[%s3 + $0x24] sm:$0xf]
  %v547 = vld [vmem:[%s3 + $0x28] sm:$0xf]
  %v548 = vld [vmem:[%s3 + $0x2c] sm:$0xf]
  %v549 = vld [vmem:[%s3 + $0x30] sm:$0xf]
  %v550 = vld [vmem:[%s3 + $0x34] sm:$0xf]
  %v551 = vld [vmem:[%s3 + $0x38] sm:$0xf]
  %v552 = vpack.c.bf16 %v481, %v477
  %v553 = vpack.c.bf16 %v482, %v478
  %v554 = vpack.c.bf16 %v483, %v479
  %v555 = vpack.c.bf16 %v484, %v480
  %v556 = vpack.c.bf16 %v489, %v485
  %v557 = vpack.c.bf16 %v490, %v486
  %v558 = vpack.c.bf16 %v491, %v487
  %v559 = vpack.c.bf16 %v492, %v488
  %v560 = vpack.c.bf16 %v497, %v493
  %v561 = vpack.c.bf16 %v498, %v494
  %v562 = vpack.c.bf16 %v499, %v495
  %v563 = vpack.c.bf16 %v500, %v496
  %v564 = vpack.c.bf16 %v505, %v501
  %v565 = vpack.c.bf16 %v506, %v502
  %v566 = vpack.c.bf16 %v507, %v503
  %v567 = vpack.c.bf16 %v508, %v504
  %v568 = vpack.c.bf16 %v513, %v509
  %v569 = vpack.c.bf16 %v514, %v510
  %v570 = vpack.c.bf16 %v515, %v511
  %v571 = vpack.c.bf16 %v516, %v512
  %v572 = vpack.c.bf16 %v521, %v517
  %v573 = vpack.c.bf16 %v522, %v518
  %v574 = vpack.c.bf16 %v523, %v519
  %v575 = vpack.c.bf16 %v524, %v520
  %v576 = vpack.c.bf16 %v529, %v525
  %v577 = vpack.c.bf16 %v530, %v526
  %v578 = vpack.c.bf16 %v531, %v527
  %v579 = vpack.c.bf16 %v532, %v528
  %v580 = vpack.c.bf16 %v533, %v533
  %v581 = vpack.c.bf16 %v534, %v534
  %v582 = vpack.c.bf16 %v535, %v535
  %v583 = vpack.c.bf16 %v536, %v536
  %v584 = vld [vmem:[%s4] sm:$0xff]
  %v585 = vld [vmem:[%s4 + $0x8] sm:$0xff]
  %v586 = vld [vmem:[%s4 + $0x10] sm:$0xff]
  %v587 = vld [vmem:[%s4 + $0x18] sm:$0xff]
  %v588 = vld [vmem:[%s4 + $0x20] sm:$0xff]
  %v589 = vld [vmem:[%s4 + $0x28] sm:$0xff]
  %v590 = vld [vmem:[%s4 + $0x30] sm:$0xff]
  %v591 = vld [vmem:[%s4 + $0x38] sm:$0xff]
  %v592 = vld [vmem:[%s4 + $0x40] sm:$0xff]
  %v593 = vld [vmem:[%s4 + $0x48] sm:$0xff]
  %v594 = vld [vmem:[%s4 + $0x50] sm:$0xff]
  %v595 = vld [vmem:[%s4 + $0x58] sm:$0xff]
  %v596 = vld [vmem:[%s4 + $0x60] sm:$0xff]
  %v597 = vld [vmem:[%s4 + $0x68] sm:$0xff]
  %v598 = vld [vmem:[%s4 + $0x70] sm:$0xff]
  %600 = vset.pattern.permute.xlu0 0
  %601 = vperm.xlu0 %600, %v584
  %v602 = vpop.permute.xlu0 %601
  %605 = vset.pattern.permute.xlu0 0
  %606 = vperm.xlu0 %605, %v585
  %v607 = vpop.permute.xlu0 %606
  %610 = vset.pattern.permute.xlu0 0
  %611 = vperm.xlu0 %610, %v586
  %v612 = vpop.permute.xlu0 %611
  %615 = vset.pattern.permute.xlu0 0
  %616 = vperm.xlu0 %615, %v587
  %v617 = vpop.permute.xlu0 %616
  %620 = vset.pattern.permute.xlu0 0
  %621 = vperm.xlu0 %620, %v588
  %v622 = vpop.permute.xlu0 %621
  %625 = vset.pattern.permute.xlu0 0
  %626 = vperm.xlu0 %625, %v589
  %v627 = vpop.permute.xlu0 %626
  %630 = vset.pattern.permute.xlu0 0
  %631 = vperm.xlu0 %630, %v590
  %v632 = vpop.permute.xlu0 %631
  %635 = vset.pattern.permute.xlu0 0
  %636 = vperm.xlu0 %635, %v591
  %v637 = vpop.permute.xlu0 %636
  %640 = vset.pattern.permute.xlu0 0
  %641 = vperm.xlu0 %640, %v592
  %v642 = vpop.permute.xlu0 %641
  %645 = vset.pattern.permute.xlu0 0
  %646 = vperm.xlu0 %645, %v593
  %v647 = vpop.permute.xlu0 %646
  %650 = vset.pattern.permute.xlu0 0
  %651 = vperm.xlu0 %650, %v594
  %v652 = vpop.permute.xlu0 %651
  %655 = vset.pattern.permute.xlu0 0
  %656 = vperm.xlu0 %655, %v595
  %v657 = vpop.permute.xlu0 %656
  %660 = vset.pattern.permute.xlu0 0
  %661 = vperm.xlu0 %660, %v596
  %v662 = vpop.permute.xlu0 %661
  %665 = vset.pattern.permute.xlu0 0
  %666 = vperm.xlu0 %665, %v597
  %v667 = vpop.permute.xlu0 %666
  %670 = vset.pattern.permute.xlu0 0
  %671 = vperm.xlu0 %670, %v598
  %v672 = vpop.permute.xlu0 %671
  %v689 = vunpack.c.l.b16 %v537
  %v690 = vunpack.c.l.b16 %v538
  %v691 = vunpack.c.l.b16 %v539
  %v692 = vunpack.c.l.b16 %v540
  %v693 = vunpack.c.l.b16 %v541
  %v694 = vunpack.c.l.b16 %v542
  %v695 = vunpack.c.l.b16 %v543
  %v696 = vunpack.c.l.b16 %v544
  %v697 = vunpack.c.l.b16 %v545
  %v698 = vunpack.c.l.b16 %v546
  %v699 = vunpack.c.l.b16 %v547
  %v700 = vunpack.c.l.b16 %v548
  %v701 = vunpack.c.l.b16 %v549
  %v702 = vunpack.c.l.b16 %v550
  %v703 = vunpack.c.l.b16 %v551
  %v704 = vpack.c.b16 %v690, %v689
  %v705 = vpack.c.b16 %v692, %v691
  %v706 = vpack.c.b16 %v694, %v693
  %v707 = vpack.c.b16 %v696, %v695
  %v708 = vpack.c.b16 %v698, %v697
  %v709 = vpack.c.b16 %v700, %v699
  %v710 = vpack.c.b16 %v702, %v701
  %v711 = vpack.c.b16 %v703, %v703
  %vm712 = vcmask 982016
  %v714 = vsel %vm712, %v704, 0
  %v717 = vsel %vm712, %v705, 0
  %v720 = vsel %vm712, %v706, 0
  %v723 = vsel %vm712, %v707, 0
  %v726 = vsel %vm712, %v708, 0
  %v729 = vsel %vm712, %v709, 0
  %v732 = vsel %vm712, %v710, 0
  %v735 = vsel %vm712, %v711, 0
  %vm737 = vcmask 1043456
  %v739 = vsel %vm737, %v580, 0
  %v742 = vsel %vm737, %v581, 0
  %v745 = vsel %vm737, %v582, 0
  %v748 = vsel %vm737, %v583, 0
  %750 = vmatprep.subr.bf16.mxu0 %v742
  %751 = vmatpush1.bf16.msra.mxu0 %v739
  %752 = vmatprep.subr.bf16.mxu0 %v577
  %753 = vmatpush1.bf16.msra.mxu0 %v576
  %754 = vmatprep.subr.bf16.mxu0 %v573
  %755 = vmatpush1.bf16.msra.mxu0 %v572
  %756 = vmatprep.subr.bf16.mxu0 %v569
  %757 = vmatpush1.bf16.msra.mxu0 %v568
  %758 = vmatprep.subr.bf16.mxu0 %v565
  %759 = vmatpush1.bf16.msra.mxu0 %v564
  %760 = vmatprep.subr.bf16.mxu0 %v561
  %761 = vmatpush1.bf16.msra.mxu0 %v560
  %762 = vmatprep.subr.bf16.mxu0 %v557
  %763 = vmatpush1.bf16.msra.mxu0 %v556
  %764 = vmatprep.subr.bf16.mxu0 %v553
  %765 = vmatpush1.bf16.msra.mxu0 %v552
  %766 = vmatprep.subr.bf16.mxu0 0
  %767 = vmatpush2.bf16.msra.mxu0 0
  %768 = vmatprep.subr.bf16.mxu0 0
  %769 = vmatpush2.bf16.msra.mxu0 0
  %770 = vmatprep.subr.bf16.mxu0 0
  %771 = vmatpush2.bf16.msra.mxu0 0
  %772 = vmatprep.subr.bf16.mxu0 0
  %773 = vmatpush2.bf16.msra.mxu0 0
  %774 = vmatprep.subr.bf16.mxu0 0
  %775 = vmatpush2.bf16.msra.mxu0 0
  %776 = vmatprep.subr.bf16.mxu0 0
  %777 = vmatpush2.bf16.msra.mxu0 0
  %778 = vmatprep.subr.bf16.mxu0 0
  %779 = vmatpush2.bf16.msra.mxu0 0
  %780 = vmatprep.subr.bf16.mxu0 0
  %781 = vmatpush2.bf16.msra.mxu0 0
  %782 = vmatprep.mubr.bf16.mxu0 0
  %783 = vmatmul.mubr.bf16.gmra.mxu0 %v714
  %v784 = vpop.f32.mrf.mxu0
  %v785 = vadd.f32 %v602, %v784
  %v786 = vpop.f32.mrf.mxu0
  %v787 = vadd.f32 %v602, %v786
  %v788 = vpop.f32.mrf.mxu0
  %v789 = vadd.f32 %v607, %v788
  %v790 = vpop.f32.mrf.mxu0
  %v791 = vadd.f32 %v607, %v790
  %792 = vmatprep.mubr.bf16.mxu0 0
  %793 = vmatmul.mubr.bf16.gmra.mxu0 %v717
  %v794 = vpop.f32.mrf.mxu0
  %v795 = vadd.f32 %v612, %v794
  %v796 = vpop.f32.mrf.mxu0
  %v797 = vadd.f32 %v612, %v796
  %v798 = vpop.f32.mrf.mxu0
  %v799 = vadd.f32 %v617, %v798
  %v800 = vpop.f32.mrf.mxu0
  %v801 = vadd.f32 %v617, %v800
  %802 = vmatprep.mubr.bf16.mxu0 0
  %803 = vmatmul.mubr.bf16.gmra.mxu0 %v720
  %v804 = vpop.f32.mrf.mxu0
  %v805 = vadd.f32 %v622, %v804
  %v806 = vpop.f32.mrf.mxu0
  %v807 = vadd.f32 %v622, %v806
  %v808 = vpop.f32.mrf.mxu0
  %v809 = vadd.f32 %v627, %v808
  %v810 = vpop.f32.mrf.mxu0
  %v811 = vadd.f32 %v627, %v810
  %812 = vmatprep.mubr.bf16.mxu0 0
  %813 = vmatmul.mubr.bf16.gmra.mxu0 %v723
  %v814 = vpop.f32.mrf.mxu0
  %v815 = vadd.f32 %v632, %v814
  %v816 = vpop.f32.mrf.mxu0
  %v817 = vadd.f32 %v632, %v816
  %v818 = vpop.f32.mrf.mxu0
  %v819 = vadd.f32 %v637, %v818
  %v820 = vpop.f32.mrf.mxu0
  %v821 = vadd.f32 %v637, %v820
  %822 = vmatprep.mubr.bf16.mxu0 0
  %823 = vmatmul.mubr.bf16.gmra.mxu0 %v726
  %v824 = vpop.f32.mrf.mxu0
  %v825 = vadd.f32 %v642, %v824
  %v826 = vpop.f32.mrf.mxu0
  %v827 = vadd.f32 %v642, %v826
  %v828 = vpop.f32.mrf.mxu0
  %v829 = vadd.f32 %v647, %v828
  %v830 = vpop.f32.mrf.mxu0
  %v831 = vadd.f32 %v647, %v830
  %832 = vmatprep.mubr.bf16.mxu0 0
  %833 = vmatmul.mubr.bf16.gmra.mxu0 %v729
  %v834 = vpop.f32.mrf.mxu0
  %v835 = vadd.f32 %v652, %v834
  %v836 = vpop.f32.mrf.mxu0
  %v837 = vadd.f32 %v652, %v836
  %v838 = vpop.f32.mrf.mxu0
  %v839 = vadd.f32 %v657, %v838
  %v840 = vpop.f32.mrf.mxu0
  %v841 = vadd.f32 %v657, %v840
  %842 = vmatprep.mubr.bf16.mxu0 0
  %843 = vmatmul.mubr.bf16.gmra.mxu0 %v732
  %v844 = vpop.f32.mrf.mxu0
  %v845 = vadd.f32 %v662, %v844
  %v846 = vpop.f32.mrf.mxu0
  %v847 = vadd.f32 %v662, %v846
  %v848 = vpop.f32.mrf.mxu0
  %v849 = vadd.f32 %v667, %v848
  %v850 = vpop.f32.mrf.mxu0
  %v851 = vadd.f32 %v667, %v850
  %852 = vmatprep.mubr.bf16.mxu0 0
  %853 = vmatmul.mubr.bf16.gmra.mxu0 %v735
  %v854 = vpop.f32.mrf.mxu0
  %v855 = vadd.f32 %v672, %v854
  %v856 = vpop.f32.mrf.mxu0
  %v857 = vadd.f32 %v672, %v856
  %v858 = vpop.f32.mrf.mxu0
  %v859 = vpop.f32.mrf.mxu0
  %860 = vdwg.mxu0
  %861 = vmatprep.subr.bf16.mxu0 %v748
  %862 = vmatpush1.bf16.msra.mxu0 %v745
  %863 = vmatprep.subr.bf16.mxu0 %v579
  %864 = vmatpush1.bf16.msra.mxu0 %v578
  %865 = vmatprep.subr.bf16.mxu0 %v575
  %866 = vmatpush1.bf16.msra.mxu0 %v574
  %867 = vmatprep.subr.bf16.mxu0 %v571
  %868 = vmatpush1.bf16.msra.mxu0 %v570
  %869 = vmatprep.subr.bf16.mxu0 %v567
  %870 = vmatpush1.bf16.msra.mxu0 %v566
  %871 = vmatprep.subr.bf16.mxu0 %v563
  %872 = vmatpush1.bf16.msra.mxu0 %v562
  %873 = vmatprep.subr.bf16.mxu0 %v559
  %874 = vmatpush1.bf16.msra.mxu0 %v558
  %875 = vmatprep.subr.bf16.mxu0 %v555
  %876 = vmatpush1.bf16.msra.mxu0 %v554
  %877 = vmatprep.subr.bf16.mxu0 0
  %878 = vmatpush2.bf16.msra.mxu0 0
  %879 = vmatprep.subr.bf16.mxu0 0
  %880 = vmatpush2.bf16.msra.mxu0 0
  %881 = vmatprep.subr.bf16.mxu0 0
  %882 = vmatpush2.bf16.msra.mxu0 0
  %883 = vmatprep.subr.bf16.mxu0 0
  %884 = vmatpush2.bf16.msra.mxu0 0
  %885 = vmatprep.subr.bf16.mxu0 0
  %886 = vmatpush2.bf16.msra.mxu0 0
  %887 = vmatprep.subr.bf16.mxu0 0
  %888 = vmatpush2.bf16.msra.mxu0 0
  %889 = vmatprep.subr.bf16.mxu0 0
  %890 = vmatpush2.bf16.msra.mxu0 0
  %891 = vmatprep.subr.bf16.mxu0 0
  %892 = vmatpush2.bf16.msra.mxu0 0
  %893 = vmatprep.mubr.bf16.mxu0 0
  %894 = vmatmul.mubr.bf16.gmra.mxu0 %v714
  %v895 = vpop.f32.mrf.mxu0
  %v896 = vadd.f32 %v602, %v895
  %v897 = vpop.f32.mrf.mxu0
  %v898 = vadd.f32 %v602, %v897
  %v899 = vpop.f32.mrf.mxu0
  %v900 = vadd.f32 %v607, %v899
  %v901 = vpop.f32.mrf.mxu0
  %v902 = vadd.f32 %v607, %v901
  %903 = vmatprep.mubr.bf16.mxu0 0
  %904 = vmatmul.mubr.bf16.gmra.mxu0 %v717
  %v905 = vpop.f32.mrf.mxu0
  %v906 = vadd.f32 %v612, %v905
  %v907 = vpop.f32.mrf.mxu0
  %v908 = vadd.f32 %v612, %v907
  %v909 = vpop.f32.mrf.mxu0
  %v910 = vadd.f32 %v617, %v909
  %v911 = vpop.f32.mrf.mxu0
  %v912 = vadd.f32 %v617, %v911
  %913 = vmatprep.mubr.bf16.mxu0 0
  %914 = vmatmul.mubr.bf16.gmra.mxu0 %v720
  %v915 = vpop.f32.mrf.mxu0
  %v916 = vadd.f32 %v622, %v915
  %v917 = vpop.f32.mrf.mxu0
  %v918 = vadd.f32 %v622, %v917
  %v919 = vpop.f32.mrf.mxu0
  %v920 = vadd.f32 %v627, %v919
  %v921 = vpop.f32.mrf.mxu0
  %v922 = vadd.f32 %v627, %v921
  %923 = vmatprep.mubr.bf16.mxu0 0
  %924 = vmatmul.mubr.bf16.gmra.mxu0 %v723
  %v925 = vpop.f32.mrf.mxu0
  %v926 = vadd.f32 %v632, %v925
  %v927 = vpop.f32.mrf.mxu0
  %v928 = vadd.f32 %v632, %v927
  %v929 = vpop.f32.mrf.mxu0
  %v930 = vadd.f32 %v637, %v929
  %v931 = vpop.f32.mrf.mxu0
  %v932 = vadd.f32 %v637, %v931
  %933 = vmatprep.mubr.bf16.mxu0 0
  %934 = vmatmul.mubr.bf16.gmra.mxu0 %v726
  %v935 = vpop.f32.mrf.mxu0
  %v936 = vadd.f32 %v642, %v935
  %v937 = vpop.f32.mrf.mxu0
  %v938 = vadd.f32 %v642, %v937
  %v939 = vpop.f32.mrf.mxu0
  %v940 = vadd.f32 %v647, %v939
  %v941 = vpop.f32.mrf.mxu0
  %v942 = vadd.f32 %v647, %v941
  %943 = vmatprep.mubr.bf16.mxu0 0
  %944 = vmatmul.mubr.bf16.gmra.mxu0 %v729
  %v945 = vpop.f32.mrf.mxu0
  %v946 = vadd.f32 %v652, %v945
  %v947 = vpop.f32.mrf.mxu0
  %v948 = vadd.f32 %v652, %v947
  %v949 = vpop.f32.mrf.mxu0
  %v950 = vadd.f32 %v657, %v949
  %v951 = vpop.f32.mrf.mxu0
  %v952 = vadd.f32 %v657, %v951
  %953 = vmatprep.mubr.bf16.mxu0 0
  %954 = vmatmul.mubr.bf16.gmra.mxu0 %v732
  %v955 = vpop.f32.mrf.mxu0
  %v956 = vadd.f32 %v662, %v955
  %v957 = vpop.f32.mrf.mxu0
  %v958 = vadd.f32 %v662, %v957
  %v959 = vpop.f32.mrf.mxu0
  %v960 = vadd.f32 %v667, %v959
  %v961 = vpop.f32.mrf.mxu0
  %v962 = vadd.f32 %v667, %v961
  %963 = vmatprep.mubr.bf16.mxu0 0
  %964 = vmatmul.mubr.bf16.gmra.mxu0 %v735
  %v965 = vpop.f32.mrf.mxu0
  %v966 = vadd.f32 %v672, %v965
  %v967 = vpop.f32.mrf.mxu0
  %v968 = vadd.f32 %v672, %v967
  %v969 = vpop.f32.mrf.mxu0
  %v970 = vpop.f32.mrf.mxu0
  %971 = vdwg.mxu0
  %v972 = vmax.f32 %v785, 0.0
  %v973 = vmax.f32 %v787, 0.0
  %v974 = vmax.f32 %v896, 0.0
  %v975 = vmax.f32 %v898, 0.0
  %v976 = vmax.f32 %v789, 0.0
  %v977 = vmax.f32 %v791, 0.0
  %v978 = vmax.f32 %v900, 0.0
  %v979 = vmax.f32 %v902, 0.0
  %v980 = vmax.f32 %v795, 0.0
  %v981 = vmax.f32 %v797, 0.0
  %v982 = vmax.f32 %v906, 0.0
  %v983 = vmax.f32 %v908, 0.0
  %v984 = vmax.f32 %v799, 0.0
  %v985 = vmax.f32 %v801, 0.0
  %v986 = vmax.f32 %v910, 0.0
  %v987 = vmax.f32 %v912, 0.0
  %v988 = vmax.f32 %v805, 0.0
  %v989 = vmax.f32 %v807, 0.0
  %v990 = vmax.f32 %v916, 0.0
  %v991 = vmax.f32 %v918, 0.0
  %v992 = vmax.f32 %v809, 0.0
  %v993 = vmax.f32 %v811, 0.0
  %v994 = vmax.f32 %v920, 0.0
  %v995 = vmax.f32 %v922, 0.0
  %v996 = vmax.f32 %v815, 0.0
  %v997 = vmax.f32 %v817, 0.0
  %v998 = vmax.f32 %v926, 0.0
  %v999 = vmax.f32 %v928, 0.0
  %v1000 = vmax.f32 %v819, 0.0
  %v1001 = vmax.f32 %v821, 0.0
  %v1002 = vmax.f32 %v930, 0.0
  %v1003 = vmax.f32 %v932, 0.0
  %v1004 = vmax.f32 %v825, 0.0
  %v1005 = vmax.f32 %v827, 0.0
  %v1006 = vmax.f32 %v936, 0.0
  %v1007 = vmax.f32 %v938, 0.0
  %v1008 = vmax.f32 %v829, 0.0
  %v1009 = vmax.f32 %v831, 0.0
  %v1010 = vmax.f32 %v940, 0.0
  %v1011 = vmax.f32 %v942, 0.0
  %v1012 = vmax.f32 %v835, 0.0
  %v1013 = vmax.f32 %v837, 0.0
  %v1014 = vmax.f32 %v946, 0.0
  %v1015 = vmax.f32 %v948, 0.0
  %v1016 = vmax.f32 %v839, 0.0
  %v1017 = vmax.f32 %v841, 0.0
  %v1018 = vmax.f32 %v950, 0.0
  %v1019 = vmax.f32 %v952, 0.0
  %v1020 = vmax.f32 %v845, 0.0
  %v1021 = vmax.f32 %v847, 0.0
  %v1022 = vmax.f32 %v956, 0.0
  %v1023 = vmax.f32 %v958, 0.0
  %v1024 = vmax.f32 %v849, 0.0
  %v1025 = vmax.f32 %v851, 0.0
  %v1026 = vmax.f32 %v960, 0.0
  %v1027 = vmax.f32 %v962, 0.0
  %v1028 = vmax.f32 %v855, 0.0
  %v1029 = vmax.f32 %v857, 0.0
  %v1030 = vmax.f32 %v966, 0.0
  %v1031 = vmax.f32 %v968, 0.0
  %v1032 = vld [vmem:[%s5] sm:$0xf]
  %v1033 = vld [vmem:[%s5 + $0x4] sm:$0x1]
  %v1034 = vpack.c.bf16 %v976, %v972
  %v1035 = vpack.c.bf16 %v977, %v973
  %v1036 = vpack.c.bf16 %v978, %v974
  %v1037 = vpack.c.bf16 %v979, %v975
  %v1038 = vpack.c.bf16 %v984, %v980
  %v1039 = vpack.c.bf16 %v985, %v981
  %v1040 = vpack.c.bf16 %v986, %v982
  %v1041 = vpack.c.bf16 %v987, %v983
  %v1042 = vpack.c.bf16 %v992, %v988
  %v1043 = vpack.c.bf16 %v993, %v989
  %v1044 = vpack.c.bf16 %v994, %v990
  %v1045 = vpack.c.bf16 %v995, %v991
  %v1046 = vpack.c.bf16 %v1000, %v996
  %v1047 = vpack.c.bf16 %v1001, %v997
  %v1048 = vpack.c.bf16 %v1002, %v998
  %v1049 = vpack.c.bf16 %v1003, %v999
  %v1050 = vpack.c.bf16 %v1008, %v1004
  %v1051 = vpack.c.bf16 %v1009, %v1005
  %v1052 = vpack.c.bf16 %v1010, %v1006
  %v1053 = vpack.c.bf16 %v1011, %v1007
  %v1054 = vpack.c.bf16 %v1016, %v1012
  %v1055 = vpack.c.bf16 %v1017, %v1013
  %v1056 = vpack.c.bf16 %v1018, %v1014
  %v1057 = vpack.c.bf16 %v1019, %v1015
  %v1058 = vpack.c.bf16 %v1024, %v1020
  %v1059 = vpack.c.bf16 %v1025, %v1021
  %v1060 = vpack.c.bf16 %v1026, %v1022
  %v1061 = vpack.c.bf16 %v1027, %v1023
  %v1062 = vpack.c.bf16 %v1028, %v1028
  %v1063 = vpack.c.bf16 %v1029, %v1029
  %v1064 = vpack.c.bf16 %v1030, %v1030
  %v1065 = vpack.c.bf16 %v1031, %v1031
  %v1066 = vld [vmem:[%s6] sm:$0xff]
  %v1067 = vld [vmem:[%s6 + $0x8] sm:$0x1]
  %1069 = vset.pattern.permute.xlu0 0
  %1070 = vperm.xlu0 %1069, %v1066
  %v1071 = vpop.permute.xlu0 %1070
  %1074 = vset.pattern.permute.xlu0 0
  %1075 = vperm.xlu0 %1074, %v1067
  %v1076 = vpop.permute.xlu0 %1075
  %v1080 = vunpack.c.l.b16 %v1032
  %v1081 = vunpack.c.l.b16 %v1033
  %v1082 = vpack.c.b16 %v1081, %v1080
  %v1084 = vsel %vm712, %v1082, 0
  %v1087 = vsel %vm737, %v1062, 0
  %v1090 = vsel %vm737, %v1063, 0
  %v1093 = vsel %vm737, %v1064, 0
  %v1096 = vsel %vm737, %v1065, 0
  %1098 = vmatprep.subr.bf16.mxu0 %v1090
  %1099 = vmatpush1.bf16.msra.mxu0 %v1087
  %1100 = vmatprep.subr.bf16.mxu0 %v1059
  %1101 = vmatpush1.bf16.msra.mxu0 %v1058
  %1102 = vmatprep.subr.bf16.mxu0 %v1055
  %1103 = vmatpush1.bf16.msra.mxu0 %v1054
  %1104 = vmatprep.subr.bf16.mxu0 %v1051
  %1105 = vmatpush1.bf16.msra.mxu0 %v1050
  %1106 = vmatprep.subr.bf16.mxu0 %v1047
  %1107 = vmatpush1.bf16.msra.mxu0 %v1046
  %1108 = vmatprep.subr.bf16.mxu0 %v1043
  %1109 = vmatpush1.bf16.msra.mxu0 %v1042
  %1110 = vmatprep.subr.bf16.mxu0 %v1039
  %1111 = vmatpush1.bf16.msra.mxu0 %v1038
  %1112 = vmatprep.subr.bf16.mxu0 %v1035
  %1113 = vmatpush1.bf16.msra.mxu0 %v1034
  %1114 = vmatprep.subr.bf16.mxu0 0
  %1115 = vmatpush2.bf16.msra.mxu0 0
  %1116 = vmatprep.subr.bf16.mxu0 0
  %1117 = vmatpush2.bf16.msra.mxu0 0
  %1118 = vmatprep.subr.bf16.mxu0 0
  %1119 = vmatpush2.bf16.msra.mxu0 0
  %1120 = vmatprep.subr.bf16.mxu0 0
  %1121 = vmatpush2.bf16.msra.mxu0 0
  %1122 = vmatprep.subr.bf16.mxu0 0
  %1123 = vmatpush2.bf16.msra.mxu0 0
  %1124 = vmatprep.subr.bf16.mxu0 0
  %1125 = vmatpush2.bf16.msra.mxu0 0
  %1126 = vmatprep.subr.bf16.mxu0 0
  %1127 = vmatpush2.bf16.msra.mxu0 0
  %1128 = vmatprep.subr.bf16.mxu0 0
  %1129 = vmatpush2.bf16.msra.mxu0 0
  %1130 = vmatprep.mubr.bf16.mxu0 0
  %1131 = vmatmul.mubr.bf16.gmra.mxu0 %v1084
  %v1132 = vpop.f32.mrf.mxu0
  %v1133 = vadd.f32 %v1071, %v1132
  %v1134 = vpop.f32.mrf.mxu0
  %v1135 = vadd.f32 %v1071, %v1134
  %v1136 = vpop.f32.mrf.mxu0
  %v1137 = vadd.f32 %v1076, %v1136
  %v1138 = vpop.f32.mrf.mxu0
  %v1139 = vadd.f32 %v1076, %v1138
  %1140 = vdwg.mxu0
  %1141 = vmatprep.subr.bf16.mxu0 %v1096
  %1142 = vmatpush1.bf16.msra.mxu0 %v1093
  %1143 = vmatprep.subr.bf16.mxu0 %v1061
  %1144 = vmatpush1.bf16.msra.mxu0 %v1060
  %1145 = vmatprep.subr.bf16.mxu0 %v1057
  %1146 = vmatpush1.bf16.msra.mxu0 %v1056
  %1147 = vmatprep.subr.bf16.mxu0 %v1053
  %1148 = vmatpush1.bf16.msra.mxu0 %v1052
  %1149 = vmatprep.subr.bf16.mxu0 %v1049
  %1150 = vmatpush1.bf16.msra.mxu0 %v1048
  %1151 = vmatprep.subr.bf16.mxu0 %v1045
  %1152 = vmatpush1.bf16.msra.mxu0 %v1044
  %1153 = vmatprep.subr.bf16.mxu0 %v1041
  %1154 = vmatpush1.bf16.msra.mxu0 %v1040
  %1155 = vmatprep.subr.bf16.mxu0 %v1037
  %1156 = vmatpush1.bf16.msra.mxu0 %v1036
  %1157 = vmatprep.subr.bf16.mxu0 0
  %1158 = vmatpush2.bf16.msra.mxu0 0
  %1159 = vmatprep.subr.bf16.mxu0 0
  %1160 = vmatpush2.bf16.msra.mxu0 0
  %1161 = vmatprep.subr.bf16.mxu0 0
  %1162 = vmatpush2.bf16.msra.mxu0 0
  %1163 = vmatprep.subr.bf16.mxu0 0
  %1164 = vmatpush2.bf16.msra.mxu0 0
  %1165 = vmatprep.subr.bf16.mxu0 0
  %1166 = vmatpush2.bf16.msra.mxu0 0
  %1167 = vmatprep.subr.bf16.mxu0 0
  %1168 = vmatpush2.bf16.msra.mxu0 0
  %1169 = vmatprep.subr.bf16.mxu0 0
  %1170 = vmatpush2.bf16.msra.mxu0 0
  %1171 = vmatprep.subr.bf16.mxu0 0
  %1172 = vmatpush2.bf16.msra.mxu0 0
  %1173 = vmatprep.mubr.bf16.mxu0 0
  %1174 = vmatmul.mubr.bf16.gmra.mxu0 %v1084
  %v1175 = vpop.f32.mrf.mxu0
  %v1176 = vadd.f32 %v1071, %v1175
  %v1177 = vpop.f32.mrf.mxu0
  %v1178 = vadd.f32 %v1071, %v1177
  %v1179 = vpop.f32.mrf.mxu0
  %v1180 = vadd.f32 %v1076, %v1179
  %v1181 = vpop.f32.mrf.mxu0
  %v1182 = vadd.f32 %v1076, %v1181
  %1183 = vdwg.mxu0
  %v1184 = vtanh.pop %v1133
  %v1185 = vtanh.pop %v1135
  %v1186 = vtanh.pop %v1176
  %v1187 = vtanh.pop %v1178
  %v1188 = vtanh.pop %v1137
  %v1189 = vtanh.pop %v1139
  %v1190 = vtanh.pop %v1180
  %v1191 = vtanh.pop %v1182
  %1192 = vst [vmem:[%s7] sm:$0xff] %v1184
  %1193 = vst [vmem:[%s7 + $0x8] sm:$0xff] %v1185
  %1194 = vst [vmem:[%s7 + $0x10] sm:$0xff] %v1186
  %1195 = vst [vmem:[%s7 + $0x18] sm:$0xff] %v1187
  %1196 = vst [vmem:[%s7 + $0x20] sm:$0x1] %v1188
  %1197 = vst [vmem:[%s7 + $0x28] sm:$0x1] %v1189
  %1198 = vst [vmem:[%s7 + $0x30] sm:$0x1] %v1190
  %1199 = vst [vmem:[%s7 + $0x38] sm:$0x1] %v1191
  // Predicated region
  $region30: #{qsagent_forward.1} parent=0 // pred_check
    _
  $region31: #{qsagent_forward.1} parent=0 // pred_check_branch
    %1201 = sbr.rel (0) target = $region33
  $region32: #{qsagent_forward.1} parent=0 // pred_region
    _
  $region33: #{qsagent_forward.1} parent=0 // pred_fallthru
    _
  // Predicated region
  $region34: #{qsagent_forward.1} parent=0 // pred_check
    _
  $region35: #{qsagent_forward.1} parent=0 // pred_check_branch
    %1203 = sbr.rel (0) target = $region37
  $region36: #{qsagent_forward.1} parent=0 // pred_region
    _
  $region37: #{qsagent_forward.1} parent=0 // pred_fallthru
    _

</llo_original>
